<compile_context>
chip_gen: v6e
topology: v6e:2x2x1
jax: 0.10.0
libtpu: 0.0.40
codegen_flags: <defaults>
</compile_context>

<pallas_src>
import jax
import jax.numpy as jnp
from jax.experimental import pallas as pl
from jax.experimental.pallas import tpu as pltpu


_TARGET_BLOCK_BYTES = 6 * 1024 * 1024    # per-operand streamed block (~6 MiB)
_VMEM_LIMIT_BYTES = 48 * 1024 * 1024     # explicit scoped-VMEM budget (safe on v5e/v6e/v7x)


# --------------------------------------------------------------------------------------------
# Kernels
# --------------------------------------------------------------------------------------------
def _add_pos_kernel(x_ref, pos_ref, o_ref):
    # x_ref / o_ref: (TB, TS, D); pos_ref: (TS, D) broadcast over the batch-block dim.
    # f32 accumulation rides idle VALU slots of a purely HBM-bandwidth-bound kernel.
    x = x_ref[...].astype(jnp.float32)
    p = pos_ref[...].astype(jnp.float32)
    o_ref[...] = (x + p[None, :, :]).astype(o_ref.dtype)


def _add_pos_flat_kernel(x_ref, pos_ref, o_ref):
    # x_ref / o_ref: (TB, TF) lane-dense flattened tiles; pos_ref: (1, TF) broadcast over rows.
    x = x_ref[...].astype(jnp.float32)
    p = pos_ref[...].astype(jnp.float32)
    o_ref[...] = (x + p).astype(o_ref.dtype)


# --------------------------------------------------------------------------------------------
# Tile selection
# --------------------------------------------------------------------------------------------
def _sublane_step(itemsize):
    # Sub-32-bit dtypes pack along sublanes: dense row granularity is 8 (f32), 16 (bf16/f16),
    # 32 (int8/fp8).
    return max(8, 32 // max(1, itemsize))


def _pick_seq_tile(S, D, itemsize):
    """Seq-tile rows: sublane-aligned, (TS, D) slab <= ~_TARGET_BLOCK_BYTES (or full S)."""
    step = _sublane_step(itemsize)
    row_bytes = max(1, D * itemsize)
    max_rows = max(step, _TARGET_BLOCK_BYTES // row_bytes)
    if S <= max_rows:
        return S                       # whole sequence in one block (full-dim => always legal)
    ts = max_rows - (max_rows % step)
    return max(ts, step)


def _pick_batch_tile(B, block_bytes):
    """Fold batch rows into the block up to ~_TARGET_BLOCK_BYTES (leading dim: no alignment)."""
    tb = max(1, _TARGET_BLOCK_BYTES // max(1, block_bytes))
    return min(B, tb)


def _pick_flat_col_tile(F, itemsize, budget_bytes):
    max_cols = max(128, budget_bytes // max(1, itemsize))
    if F <= max_cols:
        return F                       # full extent: legal even when F % 128 != 0
    return max(128, max_cols - (max_cols % 128))


def _flat_tiles(B, F, itemsize):
    step = _sublane_step(itemsize)
    per_row_budget = max(128 * itemsize, _TARGET_BLOCK_BYTES // max(1, B))
    TF = _pick_flat_col_tile(F, itemsize, per_row_budget)
    if B * TF * itemsize <= _TARGET_BLOCK_BYTES or B <= step:
        return B, TF
    # Very large batch with TF pinned at its 128-lane minimum: tile batch too. TB is the
    # second-to-last block dim of the (B, F) layout, so keep it sublane-aligned.
    tb = (_TARGET_BLOCK_BYTES // max(1, TF * itemsize)) // step * step
    return min(B, max(step, tb)), TF


# --------------------------------------------------------------------------------------------
# pallas_call wrappers
# --------------------------------------------------------------------------------------------
def _learnable_encoding_3d(x, pos_table):
    B, S, D = x.shape
    max_len = pos_table.shape[0]
    itemsize = jnp.dtype(x.dtype).itemsize

    TS = _pick_seq_tile(S, D, itemsize)
    TB = _pick_batch_tile(B, TS * D * itemsize)
    n_s = pl.cdiv(S, TS)
    n_b = pl.cdiv(B, TB)

    # Pass the table unsliced; the BlockSpec windows the first S rows. Only slice when the
    # full-seq block (TS == S) is not sublane-divisible, so the block must equal the table's
    # own dims to satisfy the (8, 128) rule.
    pos_in = pos_table
    if TS == S and (S % 8 != 0) and (S != max_len):
        pos_in = pos_table[:S]

    if n_s >= 2:
        # Batch innermost: pos block index constant across the inner loop -> pos stays
        # VMEM-resident; pos HBM traffic ~ S*D, not B*S*D.
        grid = (n_s, n_b)
        x_map = lambda s, b: (b, s, 0)
        pos_map = lambda s, b: (s, 0)
    else:
        # Single seq tile: 1-D batch grid so the leading (megacore-sharded) axis has work on
        # both v7x TensorCores; the single pos block is resident either way.
        grid = (n_b,)
        x_map = lambda b: (b, 0, 0)
        pos_map = lambda b: (0, 0)

    return pl.pallas_call(
        _add_pos_kernel,
        out_shape=jax.ShapeDtypeStruct((B, S, D), x.dtype),
        grid_spec=pltpu.PrefetchScalarGridSpec(
            num_scalar_prefetch=0,
            grid=grid,
            in_specs=[
                pl.BlockSpec((TB, TS, D), x_map),
                pl.BlockSpec((TS, D), pos_map),
            ],
            out_specs=pl.BlockSpec((TB, TS, D), x_map),
        ),
        compiler_params=pltpu.CompilerParams(
            dimension_semantics=("parallel",) * len(grid),
            vmem_limit_bytes=_VMEM_LIMIT_BYTES,
        ),
    )(x, pos_in)


def _learnable_encoding_flat(x, pos_table):
    B, S, D = x.shape
    F = S * D
    itemsize = jnp.dtype(x.dtype).itemsize
    TB, TF = _flat_tiles(B, F, itemsize)
    n_f = pl.cdiv(F, TF)
    n_b = pl.cdiv(B, TB)

    x2 = x.reshape(B, F)                   # contiguous reshape
    pos2 = pos_table[:S].reshape(1, F)     # tiny one-time S*D copy; buys 128-lane-dense stores

    if n_f >= 2:
        grid = (n_f, n_b)                  # batch innermost => pos tile stays resident
        x_map = lambda f, b: (b, f)
        pos_map = lambda f, b: (0, f)
    else:
        grid = (n_b,)
        x_map = lambda b: (b, 0)
        pos_map = lambda b: (0, 0)

    out2 = pl.pallas_call(
        _add_pos_flat_kernel,
        out_shape=jax.ShapeDtypeStruct((B, F), x.dtype),
        grid_spec=pltpu.PrefetchScalarGridSpec(
            num_scalar_prefetch=0,
            grid=grid,
            in_specs=[
                pl.BlockSpec((TB, TF), x_map),
                pl.BlockSpec((1, TF), pos_map),
            ],
            out_specs=pl.BlockSpec((TB, TF), x_map),
        ),
        compiler_params=pltpu.CompilerParams(
            dimension_semantics=("parallel",) * len(grid),
            vmem_limit_bytes=_VMEM_LIMIT_BYTES,
        ),
    )(x2, pos2)
    return out2.reshape(B, S, D)


@jax.jit
def learnable_encoding(x, pos_table):
    """x: (B, S, D); pos_table: (max_len, D). Returns x + pos_table[:S][None]."""
    B, S, D = x.shape
    max_len, d_model = pos_table.shape
    assert D == d_model, "d_model mismatch between x and positional table"
    assert S <= max_len, "seq_len exceeds max_len of the positional table"

    if D % 128 == 0:
        return _learnable_encoding_3d(x, pos_table)
    # Narrow / lane-unaligned d_model: flatten to (B, S*D) so output stores are full 128-lane
    # vst instead of masked partial stores.
    return _learnable_encoding_flat(x, pos_table)


if __name__ == "__main__":
    key = jax.random.PRNGKey(0)
    k_x, k_emb, k_x2, k_emb2, k_x3, k_emb3 = jax.random.split(key, 6)

    # Case 1: module-default small shapes, narrow d_model -> lane-dense flattened path.
    batch, seq_len, d_model, max_len = 2, 8, 32, 16
    pos_table = jax.random.normal(k_emb, (max_len, d_model), dtype=jnp.float32)
    x = jax.random.normal(k_x, (batch, seq_len, d_model), dtype=jnp.float32)
    out = jax.block_until_ready(learnable_encoding(x, pos_table))
    ref = x + pos_table[:seq_len][None, :, :]
    assert jnp.allclose(out, ref, atol=1e-6), "mismatch vs reference (flat path)"

    # Case 2: lane-aligned d_model -> 3-D batch-blocked path.
    b2, s2, d2, ml2 = 2, 16, 128, 32
    pos_table2 = jax.random.normal(k_emb2, (ml2, d2), dtype=jnp.float32)
    x2 = jax.random.normal(k_x2, (b2, s2, d2), dtype=jnp.float32)
    out2 = jax.block_until_ready(learnable_encoding(x2, pos_table2))
    ref2 = x2 + pos_table2[:s2][None, :, :]
    assert jnp.allclose(out2, ref2, atol=1e-6), "mismatch vs reference (3d path)"

    # Case 3: bf16 activations + f32 table (f32-accumulate, dtype-aware sublane tiling).
    b3, s3, d3, ml3 = 2, 16, 128, 32
    pos_table3 = jax.random.normal(k_emb3, (ml3, d3), dtype=jnp.float32)
    x3 = jax.random.normal(k_x3, (b3, s3, d3), dtype=jnp.bfloat16)
    out3 = jax.block_until_ready(learnable_encoding(x3, pos_table3))
    ref3 = (x3.astype(jnp.float32) + pos_table3[:s3][None, :, :]).astype(jnp.bfloat16)
    assert jnp.allclose(out3.astype(jnp.float32), ref3.astype(jnp.float32), atol=1e-2), \
        "mismatch vs reference (bf16 path)"

    print("KERNEL_OK")
</pallas_src>

<mosaic_0001>
module attributes {stable_mosaic.version = 11 : i64} {
  func.func @_add_pos_flat_kernel(%arg0: i32, %arg1: memref<2x256xf32, #tpu.memory_space<vmem>>, %arg2: memref<1x256xf32, #tpu.memory_space<vmem>>, %arg3: memref<2x256xf32, #tpu.memory_space<vmem>>) attributes {dimension_semantics = [#tpu.dimension_semantics<parallel>], iteration_bounds = array<i64: 1>, scalar_prefetch = 0 : i64, scratch_operands = 0 : i64, tpu.core_type = #tpu.core_type<tc>, window_params = [{transform_indices = @transform_0, window_bounds = array<i64: 2, 256>}, {pipeline_mode = #tpu.pipeline_mode<synchronous>, transform_indices = @transform_1, window_bounds = array<i64: 1, 256>}, {transform_indices = @transform_2, window_bounds = array<i64: 2, 256>}]} {
    %c0 = arith.constant 0 : index
    %c0_0 = arith.constant 0 : index
    %0 = vector.load %arg1[%c0, %c0_0] : memref<2x256xf32, #tpu.memory_space<vmem>>, vector<2x256xf32>
    %c0_1 = arith.constant 0 : index
    %c0_2 = arith.constant 0 : index
    %1 = vector.load %arg2[%c0_1, %c0_2] : memref<1x256xf32, #tpu.memory_space<vmem>>, vector<1x256xf32>
    %2 = vector.broadcast %1 : vector<1x256xf32> to vector<2x256xf32>
    %3 = arith.addf %0, %2 : vector<2x256xf32>
    %c0_3 = arith.constant 0 : index
    %c0_4 = arith.constant 0 : index
    %4 = vector.load %arg3[%c0_3, %c0_4] : memref<2x256xf32, #tpu.memory_space<vmem>>, vector<2x256xf32>
    tpu.vector_store %arg3[%c0_3, %c0_4], %3 {strides = array<i32>} : memref<2x256xf32, #tpu.memory_space<vmem>>, vector<2x256xf32>,
    return
  }
  func.func @transform_0(%arg0: i32) -> (i32, i32) {
    %c0_i32 = arith.constant 0 : i32
    %c0_i32_0 = arith.constant 0 : i32
    return %arg0, %c0_i32 : i32, i32
  }
  func.func @transform_1(%arg0: i32) -> (i32, i32) {
    %c0_i32 = arith.constant 0 : i32
    %c0_i32_0 = arith.constant 0 : i32
    %c0_i32_1 = arith.constant 0 : i32
    return %c0_i32, %c0_i32_0 : i32, i32
  }
  func.func @transform_2(%arg0: i32) -> (i32, i32) {
    %c0_i32 = arith.constant 0 : i32
    %c0_i32_0 = arith.constant 0 : i32
    return %arg0, %c0_i32 : i32, i32
  }
}

</mosaic_0001>

<llo_original>
// kernel: learnable_encoding.1
$region0: #{learnable_encoding.1}
  #allocation0 [shape = 'u32[]', space=smem, size = 0x4, offset = 0x4, fixed_abs, tag = 'smem constant byte address 0x4 - core index']
  #allocation1 [shape = 'u32[144,128]{1,0:T(1,128)}', space=vmem, size = 0x12000, scoped, tag = 'internal scratch']
  %s0 = inlined_call_operand.vmem [shape: f32[2,256], index: 0, kind: input, shape index: {}]
  %s1 = inlined_call_operand.vmem [shape: f32[1,256], index: 1, kind: input, shape index: {}]
  %s2 = inlined_call_operand.vmem [shape: f32[2,256], index: 2, kind: output, shape index: {}]
  %s3 = sld [smem:[#allocation0]]
  $region18: #{learnable_encoding.1} parent=0
    _
  %s5 = ssub.s32 1, %s3
  %s6 = scalar_select 0, %s5, %s3
  // Predicated region
  $region2: #{learnable_encoding.1} parent=0 // pred_check
    _
  $region3: #{learnable_encoding.1} parent=0 // pred_check_branch
    %8 = sbr.rel (0) target = $region5
  $region4: #{learnable_encoding.1} parent=0 // pred_region
    _
  $region5: #{learnable_encoding.1} parent=0 // pred_fallthru
    _
  // Predicated region
  $region6: #{learnable_encoding.1} parent=0 // pred_check
    _
  $region7: #{learnable_encoding.1} parent=0 // pred_check_branch
    %10 = sbr.rel (0) target = $region9
  $region8: #{learnable_encoding.1} parent=0 // pred_region
    _
  $region9: #{learnable_encoding.1} parent=0 // pred_fallthru
    _
  %v11 = vld [vmem:[%s0] sm:$0xf]
  %v12 = vld [vmem:[%s1] sm:$0x3]
  %v14 = vlaneseq
  %v15 = vshrl.u32 %v14, 7
  %v16 = vsub.s32 0, %v15
  %v17 = vrot.slane %v12, %v16
  %v18 = vlaneseq
  %v19 = vshrl.u32 %v18, 7
  %v20 = vsub.s32 1, %v19
  %v21 = vrot.slane %v12, %v20
  %v22 = vcombine.low %v17, %v21
  %v24 = vunpack.c.l.s4 1983009808
  %v25 = vunpack.c.0.s8 %v24
  %v26 = vlaneseq
  %v27 = vshrl.u32 %v26, 7
  %v28 = vsub.s32 %v25, %v27
  %v29 = vrot.slane %v22, %v28
  %v31 = vadd.f32 %v11, %v29
  %32 = vst [vmem:[%s2] sm:$0xf] %v31
  // Predicated region
  $region10: #{learnable_encoding.1} parent=0 // pred_check
    _
  $region11: #{learnable_encoding.1} parent=0 // pred_check_branch
    %34 = sbr.rel (0) target = $region13
  $region12: #{learnable_encoding.1} parent=0 // pred_region
    _
  $region13: #{learnable_encoding.1} parent=0 // pred_fallthru
    _
  // Predicated region
  $region14: #{learnable_encoding.1} parent=0 // pred_check
    _
  $region15: #{learnable_encoding.1} parent=0 // pred_check_branch
    %36 = sbr.rel (0) target = $region17
  $region16: #{learnable_encoding.1} parent=0 // pred_region
    _
  $region17: #{learnable_encoding.1} parent=0 // pred_fallthru
    _

</llo_original>
